<compile_context>
chip_gen: v5e
topology: v5e:2x2
jax: 0.10.0
libtpu: 0.0.40
codegen_flags: <defaults>
</compile_context>

<pallas_src>
import jax
import jax.numpy as jnp
from jax.experimental import pallas as pl
from jax.experimental.pallas import tpu as pltpu


# ----------------------------------------------------------------------------
# Pallas kernels
# ----------------------------------------------------------------------------
def conv_pool_bn_kernel(x_ref, w_ref, b_ref, scale_ref, shift_ref, o_ref):
    """Fused conv(+bias) + ReLU + 2x2 max-pool + BatchNorm2d (inference).

    x_ref:     (1, 4, PQ, KKC)  bf16  -- 4 pool-window positions; im2col rows;
                                         K = kh*kw*Cin folded on the last axis
    w_ref:     (KKC, Cout)      bf16
    b_ref, scale_ref, shift_ref: (1, Cout) f32
    o_ref:     (1, PQ, Cout)    f32   -- pooled rows (PQ = Ho/2 * Wo/2)
    """
    w = w_ref[...]
    # Max over the four 2x2-window positions.  bias-add and ReLU commute with
    # the max (same bias for every position, ReLU monotonic), so they are
    # applied once after the reduction.
    m = jnp.dot(x_ref[0, 0], w, preferred_element_type=jnp.float32)
    for wpos in range(1, 4):                       # unrolled at trace time
        m = jnp.maximum(
            m, jnp.dot(x_ref[0, wpos], w, preferred_element_type=jnp.float32))
    y = jnp.maximum(m + b_ref[...], 0.0)           # conv bias + ReLU
    o_ref[0] = y * scale_ref[...] + shift_ref[...]  # folded BatchNorm2d affine


def fc_fused_kernel(x_ref, w1_ref, b1_ref, s1_ref, t1_ref,
                    w2_ref, b2_ref, s2_ref, t2_ref,
                    w3_ref, b3_ref, o_ref):
    """fc1+ReLU+BN1d -> fc2+ReLU+BN1d -> fc3; activations kept in VMEM."""
    h = jnp.dot(x_ref[...], w1_ref[...], preferred_element_type=jnp.float32)
    h = jnp.maximum(h + b1_ref[...], 0.0) * s1_ref[...] + t1_ref[...]
    h = jnp.dot(h.astype(w2_ref.dtype), w2_ref[...],
                preferred_element_type=jnp.float32)
    h = jnp.maximum(h + b2_ref[...], 0.0) * s2_ref[...] + t2_ref[...]
    y = jnp.dot(h.astype(w3_ref.dtype), w3_ref[...],
                preferred_element_type=jnp.float32)
    o_ref[...] = y + b3_ref[...]


# ----------------------------------------------------------------------------
# Wrappers (glue: padding, folded-K im2col, pool-window grouping)
# ----------------------------------------------------------------------------
def conv_relu_pool_bn(x_nhwc, w, b, scale, shift, *, k, pad):
    """x_nhwc: (N,H,W,Cin); w: (k*k*Cin, Cout); returns pooled NHWC output."""
    N, H, W, Cin = x_nhwc.shape
    KKC, Cout = w.shape
    xp = jnp.pad(x_nhwc, ((0, 0), (pad, pad), (pad, pad), (0, 0)))
    Ho = H + 2 * pad - k + 1
    Wo = W + 2 * pad - k + 1
    # im2col with the kernel positions folded onto the (lane-dense) channel
    # axis: (N, Ho, Wo, k*k*Cin), flat K index = (kh*k + kw)*Cin + cin.
    cols = jnp.concatenate(
        [xp[:, kh:kh + Ho, kw:kw + Wo, :] for kh in range(k) for kw in range(k)],
        axis=-1)
    Po, Qo = Ho // 2, Wo // 2
    PQ = Po * Qo
    # Group the four 2x2-pool window positions on a leading axis so the
    # in-kernel max is a reduction over a leading dim of 4.
    xw = (cols.reshape(N, Po, 2, Qo, 2, KKC)
              .transpose(0, 2, 4, 1, 3, 5)
              .reshape(N, 4, PQ, KKC)
              .astype(jnp.bfloat16))
    out = pl.pallas_call(
        conv_pool_bn_kernel,
        grid=(N,),
        in_specs=[
            pl.BlockSpec((1, 4, PQ, KKC), lambda n: (n, 0, 0, 0)),
            pl.BlockSpec((KKC, Cout), lambda n: (0, 0)),
            pl.BlockSpec((1, Cout), lambda n: (0, 0)),
            pl.BlockSpec((1, Cout), lambda n: (0, 0)),
            pl.BlockSpec((1, Cout), lambda n: (0, 0)),
        ],
        out_specs=pl.BlockSpec((1, PQ, Cout), lambda n: (n, 0, 0)),
        out_shape=jax.ShapeDtypeStruct((N, PQ, Cout), jnp.float32),
        compiler_params=pltpu.CompilerParams(dimension_semantics=("parallel",)),
    )(xw, w, b.reshape(1, Cout), scale.reshape(1, Cout), shift.reshape(1, Cout))
    return out.reshape(N, Po, Qo, Cout)


def fc_fused(x, w1, b1, s1, t1, w2, b2, s2, t2, w3, b3):
    N = x.shape[0]
    F1 = w1.shape[1]
    F2 = w2.shape[1]
    F3 = w3.shape[1]
    return pl.pallas_call(
        fc_fused_kernel,
        out_shape=jax.ShapeDtypeStruct((N, F3), jnp.float32),
    )(x.astype(jnp.bfloat16),
      w1, b1.reshape(1, F1), s1.reshape(1, F1), t1.reshape(1, F1),
      w2, b2.reshape(1, F2), s2.reshape(1, F2), t2.reshape(1, F2),
      w3, b3.reshape(1, F3))


# ----------------------------------------------------------------------------
# Parameter construction (deterministic, synthetic)
# ----------------------------------------------------------------------------
def make_bn_scale_shift(key, c, eps=1e-5):
    k1, k2, k3, k4 = jax.random.split(key, 4)
    gamma = 1.0 + 0.1 * jax.random.normal(k1, (c,), jnp.float32)
    beta = 0.1 * jax.random.normal(k2, (c,), jnp.float32)
    mean = 0.1 * jax.random.normal(k3, (c,), jnp.float32)
    var = jax.random.uniform(k4, (c,), jnp.float32, minval=0.5, maxval=1.5)
    scale = gamma / jnp.sqrt(var + eps)
    shift = beta - mean * scale
    return scale, shift


def make_conv_params(key, k, cin, cout):
    kw_, kb_ = jax.random.split(key)
    fan_in = k * k * cin
    w = jax.random.normal(kw_, (k * k * cin, cout), jnp.float32) / jnp.sqrt(fan_in)
    b = 0.01 * jax.random.normal(kb_, (cout,), jnp.float32)
    return w.astype(jnp.bfloat16), b


def make_fc_params(key, fin, fout):
    kw_, kb_ = jax.random.split(key)
    w = jax.random.normal(kw_, (fin, fout), jnp.float32) / jnp.sqrt(fin)
    b = 0.01 * jax.random.normal(kb_, (fout,), jnp.float32)
    return w.astype(jnp.bfloat16), b


# ----------------------------------------------------------------------------
# Full forward pass (TorchOSX semantics, scaled-down input 32x32)
# ----------------------------------------------------------------------------
def torch_osx_forward(x_nchw, params):
    out = jnp.transpose(x_nchw, (0, 2, 3, 1))            # NCHW -> NHWC
    for i in range(4):
        out = conv_relu_pool_bn(
            out,
            params[f"conv{i+1}_w"], params[f"conv{i+1}_b"],
            params[f"bn{i+1}_scale"], params[f"bn{i+1}_shift"],
            k=5, pad=2)
    # flatten in PyTorch NCHW order: (N, C, H, W) -> (N, C*H*W)
    n = out.shape[0]
    feat = jnp.transpose(out, (0, 3, 1, 2)).reshape(n, -1)
    return fc_fused(
        feat,
        params["fc1_w"], params["fc1_b"], params["bn5_scale"], params["bn5_shift"],
        params["fc2_w"], params["fc2_b"], params["bn6_scale"], params["bn6_shift"],
        params["fc3_w"], params["fc3_b"])


if __name__ == "__main__":
    # Small-shape instantiation consistent with the module:
    #  kernels=[5,5,5,5], out_channels=[32,64,128,256], input 1x32x32
    #  -> after 4 (conv pad=2, maxpool/2): spatial 2x2, flatten = 256*2*2 = 1024
    key = jax.random.PRNGKey(0)
    keys = jax.random.split(key, 16)

    N, H, W = 2, 32, 32
    kernels = [5, 5, 5, 5]
    out_channels = [32, 64, 128, 256]
    in_channels = [1] + out_channels[:3]

    params = {}
    for i in range(4):
        w, b = make_conv_params(keys[i], kernels[i], in_channels[i], out_channels[i])
        params[f"conv{i+1}_w"] = w
        params[f"conv{i+1}_b"] = b
        s, sh = make_bn_scale_shift(keys[4 + i], out_channels[i])
        params[f"bn{i+1}_scale"] = s
        params[f"bn{i+1}_shift"] = sh

    last_size = out_channels[3] * (H // 16) * (W // 16)     # 256 * 2 * 2 = 1024
    params["fc1_w"], params["fc1_b"] = make_fc_params(keys[8], last_size, 1024)
    params["bn5_scale"], params["bn5_shift"] = make_bn_scale_shift(keys[9], 1024)
    params["fc2_w"], params["fc2_b"] = make_fc_params(keys[10], 1024, 1024)
    params["bn6_scale"], params["bn6_shift"] = make_bn_scale_shift(keys[11], 1024)
    params["fc3_w"], params["fc3_b"] = make_fc_params(keys[12], 1024, 42)

    x = jax.random.normal(keys[13], (N, 1, H, W), jnp.float32)   # NCHW like PyTorch

    logits = torch_osx_forward(x, params)
    logits = jax.block_until_ready(logits)

    assert logits.shape == (N, 42), logits.shape
    assert bool(jnp.all(jnp.isfinite(logits)))
    print("KERNEL_OK")
</pallas_src>

<mosaic_0001>
module attributes {stable_mosaic.version = 11 : i64} {
  func.func @conv_pool_bn_kernel(%arg0: i32, %arg1: memref<1x4x256x25xbf16, #tpu.memory_space<vmem>>, %arg2: memref<25x32xbf16, #tpu.memory_space<vmem>>, %arg3: memref<1x32xf32, #tpu.memory_space<vmem>>, %arg4: memref<1x32xf32, #tpu.memory_space<vmem>>, %arg5: memref<1x32xf32, #tpu.memory_space<vmem>>, %arg6: memref<1x256x32xf32, #tpu.memory_space<vmem>>) attributes {dimension_semantics = [#tpu.dimension_semantics<parallel>], iteration_bounds = array<i64: 2>, scalar_prefetch = 0 : i64, scratch_operands = 0 : i64, tpu.core_type = #tpu.core_type<tc>, window_params = [{transform_indices = @transform_0, window_bounds = array<i64: 1, 4, 256, 25>}, {pipeline_mode = #tpu.pipeline_mode<synchronous>, transform_indices = @transform_1, window_bounds = array<i64: 25, 32>}, {pipeline_mode = #tpu.pipeline_mode<synchronous>, transform_indices = @transform_2, window_bounds = array<i64: 1, 32>}, {pipeline_mode = #tpu.pipeline_mode<synchronous>, transform_indices = @transform_3, window_bounds = array<i64: 1, 32>}, {pipeline_mode = #tpu.pipeline_mode<synchronous>, transform_indices = @transform_4, window_bounds = array<i64: 1, 32>}, {transform_indices = @transform_5, window_bounds = array<i64: 1, 256, 32>}]} {
    %c0 = arith.constant 0 : index
    %c0_0 = arith.constant 0 : index
    %0 = vector.load %arg2[%c0, %c0_0] : memref<25x32xbf16, #tpu.memory_space<vmem>>, vector<25x32xbf16>
    %c0_1 = arith.constant 0 : index
    %c0_2 = arith.constant 0 : index
    %c0_3 = arith.constant 0 : index
    %c0_4 = arith.constant 0 : index
    %1 = vector.load %arg1[%c0_1, %c0_2, %c0_3, %c0_4] : memref<1x4x256x25xbf16, #tpu.memory_space<vmem>>, vector<1x1x256x25xbf16>
    %2 = vector.shape_cast %1 : vector<1x1x256x25xbf16> to vector<256x25xbf16>
    %cst = arith.constant dense<0.000000e+00> : vector<256x32xf32>
    %3 = tpu.matmul %2, %0, %cst {dimension_numbers = #tpu.dot_dimension_numbers<[1], [0], [0], [1], [0, 0, 1, 1], [], []>} : vector<256x25xbf16>, vector<25x32xbf16>, vector<256x32xf32> -> vector<256x32xf32>
    %c0_5 = arith.constant 0 : index
    %c1 = arith.constant 1 : index
    %c0_6 = arith.constant 0 : index
    %c0_7 = arith.constant 0 : index
    %4 = vector.load %arg1[%c0_5, %c1, %c0_6, %c0_7] : memref<1x4x256x25xbf16, #tpu.memory_space<vmem>>, vector<1x1x256x25xbf16>
    %5 = vector.shape_cast %4 : vector<1x1x256x25xbf16> to vector<256x25xbf16>
    %cst_8 = arith.constant dense<0.000000e+00> : vector<256x32xf32>
    %6 = tpu.matmul %5, %0, %cst_8 {dimension_numbers = #tpu.dot_dimension_numbers<[1], [0], [0], [1], [0, 0, 1, 1], [], []>} : vector<256x25xbf16>, vector<25x32xbf16>, vector<256x32xf32> -> vector<256x32xf32>
    %7 = arith.maximumf %3, %6 : vector<256x32xf32>
    %c0_9 = arith.constant 0 : index
    %c2 = arith.constant 2 : index
    %c0_10 = arith.constant 0 : index
    %c0_11 = arith.constant 0 : index
    %8 = vector.load %arg1[%c0_9, %c2, %c0_10, %c0_11] : memref<1x4x256x25xbf16, #tpu.memory_space<vmem>>, vector<1x1x256x25xbf16>
    %9 = vector.shape_cast %8 : vector<1x1x256x25xbf16> to vector<256x25xbf16>
    %cst_12 = arith.constant dense<0.000000e+00> : vector<256x32xf32>
    %10 = tpu.matmul %9, %0, %cst_12 {dimension_numbers = #tpu.dot_dimension_numbers<[1], [0], [0], [1], [0, 0, 1, 1], [], []>} : vector<256x25xbf16>, vector<25x32xbf16>, vector<256x32xf32> -> vector<256x32xf32>
    %11 = arith.maximumf %7, %10 : vector<256x32xf32>
    %c0_13 = arith.constant 0 : index
    %c3 = arith.constant 3 : index
    %c0_14 = arith.constant 0 : index
    %c0_15 = arith.constant 0 : index
    %12 = vector.load %arg1[%c0_13, %c3, %c0_14, %c0_15] : memref<1x4x256x25xbf16, #tpu.memory_space<vmem>>, vector<1x1x256x25xbf16>
    %13 = vector.shape_cast %12 : vector<1x1x256x25xbf16> to vector<256x25xbf16>
    %cst_16 = arith.constant dense<0.000000e+00> : vector<256x32xf32>
    %14 = tpu.matmul %13, %0, %cst_16 {dimension_numbers = #tpu.dot_dimension_numbers<[1], [0], [0], [1], [0, 0, 1, 1], [], []>} : vector<256x25xbf16>, vector<25x32xbf16>, vector<256x32xf32> -> vector<256x32xf32>
    %15 = arith.maximumf %11, %14 : vector<256x32xf32>
    %c0_17 = arith.constant 0 : index
    %c0_18 = arith.constant 0 : index
    %16 = vector.load %arg3[%c0_17, %c0_18] : memref<1x32xf32, #tpu.memory_space<vmem>>, vector<1x32xf32>
    %17 = vector.broadcast %16 : vector<1x32xf32> to vector<256x32xf32>
    %18 = arith.addf %15, %17 : vector<256x32xf32>
    %cst_19 = arith.constant 0.000000e+00 : f32
    %19 = vector.broadcast %cst_19 : f32 to vector<256x32xf32>
    %20 = arith.maximumf %18, %19 : vector<256x32xf32>
    %c0_20 = arith.constant 0 : index
    %c0_21 = arith.constant 0 : index
    %21 = vector.load %arg4[%c0_20, %c0_21] : memref<1x32xf32, #tpu.memory_space<vmem>>, vector<1x32xf32>
    %22 = vector.broadcast %21 : vector<1x32xf32> to vector<256x32xf32>
    %23 = arith.mulf %20, %22 : vector<256x32xf32>
    %c0_22 = arith.constant 0 : index
    %c0_23 = arith.constant 0 : index
    %24 = vector.load %arg5[%c0_22, %c0_23] : memref<1x32xf32, #tpu.memory_space<vmem>>, vector<1x32xf32>
    %25 = vector.broadcast %24 : vector<1x32xf32> to vector<256x32xf32>
    %26 = arith.addf %23, %25 : vector<256x32xf32>
    %c0_24 = arith.constant 0 : index
    %c0_25 = arith.constant 0 : index
    %c0_26 = arith.constant 0 : index
    %27 = vector.load %arg6[%c0_24, %c0_25, %c0_26] : memref<1x256x32xf32, #tpu.memory_space<vmem>>, vector<1x256x32xf32>
    %28 = vector.shape_cast %27 : vector<1x256x32xf32> to vector<256x32xf32>
    %29 = vector.shape_cast %26 : vector<256x32xf32> to vector<1x256x32xf32>
    tpu.vector_store %arg6[%c0_24, %c0_25, %c0_26], %29 {strides = array<i32>} : memref<1x256x32xf32, #tpu.memory_space<vmem>>, vector<1x256x32xf32>,
    return
  }
  func.func @transform_0(%arg0: i32) -> (i32, i32, i32, i32) {
    %c0_i32 = arith.constant 0 : i32
    %c0_i32_0 = arith.constant 0 : i32
    %c0_i32_1 = arith.constant 0 : i32
    %c0_i32_2 = arith.constant 0 : i32
    return %arg0, %c0_i32, %c0_i32_0, %c0_i32_1 : i32, i32, i32, i32
  }
  func.func @transform_1(%arg0: i32) -> (i32, i32) {
    %c0_i32 = arith.constant 0 : i32
    %c0_i32_0 = arith.constant 0 : i32
    %c0_i32_1 = arith.constant 0 : i32
    return %c0_i32, %c0_i32_0 : i32, i32
  }
  func.func @transform_2(%arg0: i32) -> (i32, i32) {
    %c0_i32 = arith.constant 0 : i32
    %c0_i32_0 = arith.constant 0 : i32
    %c0_i32_1 = arith.constant 0 : i32
    return %c0_i32, %c0_i32_0 : i32, i32
  }
  func.func @transform_3(%arg0: i32) -> (i32, i32) {
    %c0_i32 = arith.constant 0 : i32
    %c0_i32_0 = arith.constant 0 : i32
    %c0_i32_1 = arith.constant 0 : i32
    return %c0_i32, %c0_i32_0 : i32, i32
  }
  func.func @transform_4(%arg0: i32) -> (i32, i32) {
    %c0_i32 = arith.constant 0 : i32
    %c0_i32_0 = arith.constant 0 : i32
    %c0_i32_1 = arith.constant 0 : i32
    return %c0_i32, %c0_i32_0 : i32, i32
  }
  func.func @transform_5(%arg0: i32) -> (i32, i32, i32) {
    %c0_i32 = arith.constant 0 : i32
    %c0_i32_0 = arith.constant 0 : i32
    %c0_i32_1 = arith.constant 0 : i32
    return %arg0, %c0_i32, %c0_i32_0 : i32, i32, i32
  }
}

</mosaic_0001>

<llo_original>
// kernel: tpu_custom_call.1
$region0: #{tpu_custom_call.1}
  #allocation0 [shape = 'u32[]', space=smem, size = 0x4, offset = 0x4, fixed_abs, tag = 'smem constant byte address 0x4 - core index']
  #allocation1 [shape = 'u32[72,128]{1,0:T(1,128)}', space=vmem, size = 0x9000, scoped, tag = 'internal scratch']
  %s0 = inlined_call_operand.vmem [shape: bf16[2,4,256,25], index: 0, kind: input, shape index: {}]
  %s1 = inlined_call_operand.vmem [shape: bf16[25,32], index: 1, kind: input, shape index: {}]
  %s2 = inlined_call_operand.vmem [shape: f32[1,32], index: 2, kind: input, shape index: {}]
  %s3 = inlined_call_operand.vmem [shape: f32[1,32], index: 3, kind: input, shape index: {}]
  %s4 = inlined_call_operand.vmem [shape: f32[1,32], index: 4, kind: input, shape index: {}]
  %s5 = inlined_call_operand.vmem [shape: f32[2,256,32], index: 5, kind: output, shape index: {}]
  %s6 = sld [smem:[#allocation0]]
  $region53: #{tpu_custom_call.1} parent=0
    _
  %s8 = ssub.s32 1, %s6
  %s9 = scalar_select 0, %s8, %s6
  loop: start=0, step=1, limit=4
  $region2: #{tpu_custom_call.1} parent=0 // loop_pre_header
    _
  $region3: #{tpu_custom_call.1} parent=0 // loop_header
    %s11 = sphi 0, %s15
    %p12 = scmp.ge.s32.totalorder %s11, 4
    %s21 = sphi 0, %s23
    %s24 = sphi 0, %s21
    %s25 = sphi 0, %s24
    %s41 = sphi 0, %s25
    %s45 = sphi 0, %s45
    %s47 = sphi 0, %s45
    %s48 = sphi 0, %s47
    %s62 = sphi 0, %s48
    %s66 = sphi 0, %s66
    %s68 = sphi 0, %s66
    %s69 = sphi 0, %s68
    %s83 = sphi 0, %s69
    %s87 = sphi 0, %s87
    %s89 = sphi 0, %s87
    %s90 = sphi 0, %s89
    %s104 = sphi 0, %s90
    %s108 = sphi 0, %s108
    %s110 = sphi 0, %s108
    %s111 = sphi 0, %s110
    %s125 = sphi 0, %s111
    %s131 = sphi 0, %s133
    %s134 = sphi 0, %s131
    %s135 = sphi 0, %s134
    %s151 = sphi 0, %s135
  $region4: #{tpu_custom_call.1} parent=0 // loop_header_branch
    %14 = sbr.rel (%p12) target = $region8
  $region5: #{tpu_custom_call.1} parent=0 // loop_body
    %s16 = ssub.s32 %s11, 1
    %s17 = ssub.s32 %s11, 2
    %s18 = sadd.s32 %s11, 1
    %s19 = ssub.s32 %s11, %s18
    %p20 = scmp.eq.s32.totalorder %s19, 0
    %s22 = sadd.s32 %s21, 1
    %s23 = scalar_select %p20, %s21, %s22
    %p26 = pneg %p20
    %p27 = scmp.eq.s32.totalorder %s11, 1
    %p28 = por %p26, %p27
    %p29 = scmp.ne.s32.totalorder %s21, %s24
    %p30 = scmp.eq.s32.totalorder %s11, 0
    %p31 = por %p29, %p30
    %p32 = scmp.ne.s32.totalorder %s21, %s24
    %p33 = scmp.eq.s32.totalorder %s16, 1
    %p34 = por %p32, %p33
    %p35 = scmp.ne.s32.totalorder %s24, %s25
    %p36 = scmp.eq.s32.totalorder %s16, 0
    %p37 = por %p35, %p36
    %p38 = scmp.ne.s32.totalorder %s24, %s25
    %p39 = scmp.eq.s32.totalorder %s17, 1
    %p40 = por %p38, %p39
    %p42 = scmp.ne.s32.totalorder %s25, %s41
    %p43 = scmp.eq.s32.totalorder %s17, 0
    %p44 = por %p42, %p43
    %s46 = sadd.s32 %s45, 1
    %p49 = scmp.eq.s32.totalorder %s11, 1
    %p50 = scmp.ne.s32.totalorder %s45, %s47
    %p51 = scmp.eq.s32.totalorder %s11, 0
    %p52 = por %p50, %p51
    %p53 = scmp.ne.s32.totalorder %s45, %s47
    %p54 = scmp.eq.s32.totalorder %s16, 1
    %p55 = por %p53, %p54
    %p56 = scmp.ne.s32.totalorder %s47, %s48
    %p57 = scmp.eq.s32.totalorder %s16, 0
    %p58 = por %p56, %p57
    %p59 = scmp.ne.s32.totalorder %s47, %s48
    %p60 = scmp.eq.s32.totalorder %s17, 1
    %p61 = por %p59, %p60
    %p63 = scmp.ne.s32.totalorder %s48, %s62
    %p64 = scmp.eq.s32.totalorder %s17, 0
    %p65 = por %p63, %p64
    %s67 = sadd.s32 %s66, 1
    %p70 = scmp.eq.s32.totalorder %s11, 1
    %p71 = scmp.ne.s32.totalorder %s66, %s68
    %p72 = scmp.eq.s32.totalorder %s11, 0
    %p73 = por %p71, %p72
    %p74 = scmp.ne.s32.totalorder %s66, %s68
    %p75 = scmp.eq.s32.totalorder %s16, 1
    %p76 = por %p74, %p75
    %p77 = scmp.ne.s32.totalorder %s68, %s69
    %p78 = scmp.eq.s32.totalorder %s16, 0
    %p79 = por %p77, %p78
    %p80 = scmp.ne.s32.totalorder %s68, %s69
    %p81 = scmp.eq.s32.totalorder %s17, 1
    %p82 = por %p80, %p81
    %p84 = scmp.ne.s32.totalorder %s69, %s83
    %p85 = scmp.eq.s32.totalorder %s17, 0
    %p86 = por %p84, %p85
    %s88 = sadd.s32 %s87, 1
    %p91 = scmp.eq.s32.totalorder %s11, 1
    %p92 = scmp.ne.s32.totalorder %s87, %s89
    %p93 = scmp.eq.s32.totalorder %s11, 0
    %p94 = por %p92, %p93
    %p95 = scmp.ne.s32.totalorder %s87, %s89
    %p96 = scmp.eq.s32.totalorder %s16, 1
    %p97 = por %p95, %p96
    %p98 = scmp.ne.s32.totalorder %s89, %s90
    %p99 = scmp.eq.s32.totalorder %s16, 0
    %p100 = por %p98, %p99
    %p101 = scmp.ne.s32.totalorder %s89, %s90
    %p102 = scmp.eq.s32.totalorder %s17, 1
    %p103 = por %p101, %p102
    %p105 = scmp.ne.s32.totalorder %s90, %s104
    %p106 = scmp.eq.s32.totalorder %s17, 0
    %p107 = por %p105, %p106
    %s109 = sadd.s32 %s108, 1
    %p112 = scmp.eq.s32.totalorder %s11, 1
    %p113 = scmp.ne.s32.totalorder %s108, %s110
    %p114 = scmp.eq.s32.totalorder %s11, 0
    %p115 = por %p113, %p114
    %p116 = scmp.ne.s32.totalorder %s108, %s110
    %p117 = scmp.eq.s32.totalorder %s16, 1
    %p118 = por %p116, %p117
    %p119 = scmp.ne.s32.totalorder %s110, %s111
    %p120 = scmp.eq.s32.totalorder %s16, 0
    %p121 = por %p119, %p120
    %p122 = scmp.ne.s32.totalorder %s110, %s111
    %p123 = scmp.eq.s32.totalorder %s17, 1
    %p124 = por %p122, %p123
    %p126 = scmp.ne.s32.totalorder %s111, %s125
    %p127 = scmp.eq.s32.totalorder %s17, 0
    %p128 = por %p126, %p127
    %s129 = ssub.s32 %s11, %s18
    %p130 = scmp.eq.s32.totalorder %s129, 0
    %s132 = sadd.s32 %s131, 1
    %s133 = scalar_select %p130, %s131, %s132
    %p136 = pneg %p130
    %p137 = scmp.eq.s32.totalorder %s11, 1
    %p138 = por %p136, %p137
    %p139 = scmp.ne.s32.totalorder %s131, %s134
    %p140 = scmp.eq.s32.totalorder %s11, 0
    %p141 = por %p139, %p140
    %p142 = scmp.ne.s32.totalorder %s131, %s134
    %p143 = scmp.eq.s32.totalorder %s16, 1
    %p144 = por %p142, %p143
    %p145 = scmp.ne.s32.totalorder %s134, %s135
    %p146 = scmp.eq.s32.totalorder %s16, 0
    %p147 = por %p145, %p146
    %p148 = scmp.ne.s32.totalorder %s134, %s135
    %p149 = scmp.eq.s32.totalorder %s17, 1
    %p150 = por %p148, %p149
    %p152 = scmp.ne.s32.totalorder %s135, %s151
    %p153 = scmp.eq.s32.totalorder %s17, 0
    %p154 = por %p152, %p153
    %p155 = scmp.le.s32.totalorder 1, %s11
    %p156 = scmp.lt.s32.totalorder %s11, 3
    %p157 = pnand %p155, %p156
    %p158 = pneg %p157
    // Predicated region
    $region9: #{tpu_custom_call.1} parent=5 // pred_check
      _
    $region10: #{tpu_custom_call.1} parent=5 // pred_check_branch
      %160 = sbr.rel (%p157) target = $region12
    $region11: #{tpu_custom_call.1} parent=5 // pred_region
      %s161 = ssub.s32 %s11, 1
      // Predicated region
      $region13: #{tpu_custom_call.1} parent=11 // pred_check
        %p162 = pneg %p58
      $region14: #{tpu_custom_call.1} parent=11 // pred_check_branch
        %164 = sbr.rel (%p162) target = $region16
      $region15: #{tpu_custom_call.1} parent=11 // pred_region
        _
      $region16: #{tpu_custom_call.1} parent=11 // pred_fallthru
        _
      // Predicated region
      $region17: #{tpu_custom_call.1} parent=11 // pred_check
        %p165 = pneg %p79
      $region18: #{tpu_custom_call.1} parent=11 // pred_check_branch
        %167 = sbr.rel (%p165) target = $region20
      $region19: #{tpu_custom_call.1} parent=11 // pred_region
        _
      $region20: #{tpu_custom_call.1} parent=11 // pred_fallthru
        _
      // Predicated region
      $region21: #{tpu_custom_call.1} parent=11 // pred_check
        %p168 = pneg %p100
      $region22: #{tpu_custom_call.1} parent=11 // pred_check_branch
        %170 = sbr.rel (%p168) target = $region24
      $region23: #{tpu_custom_call.1} parent=11 // pred_region
        _
      $region24: #{tpu_custom_call.1} parent=11 // pred_fallthru
        _
      // Predicated region
      $region25: #{tpu_custom_call.1} parent=11 // pred_check
        %p171 = pneg %p121
      $region26: #{tpu_custom_call.1} parent=11 // pred_check_branch
        %173 = sbr.rel (%p171) target = $region28
      $region27: #{tpu_custom_call.1} parent=11 // pred_region
        _
      $region28: #{tpu_custom_call.1} parent=11 // pred_fallthru
        _
    $region12: #{tpu_custom_call.1} parent=5 // pred_fallthru
      _
    %p174 = scmp.lt.s32.totalorder %s11, 2
    // Predicated region
    $region29: #{tpu_custom_call.1} parent=5 // pred_check
      %p175 = pneg %p174
    $region30: #{tpu_custom_call.1} parent=5 // pred_check_branch
      %177 = sbr.rel (%p175) target = $region32
    $region31: #{tpu_custom_call.1} parent=5 // pred_region
      // Predicated region
      $region33: #{tpu_custom_call.1} parent=31 // pred_check
        %p178 = pneg %p31
      $region34: #{tpu_custom_call.1} parent=31 // pred_check_branch
        %180 = sbr.rel (%p178) target = $region36
      $region35: #{tpu_custom_call.1} parent=31 // pred_region
        %p181 = scmp.lt.s32.totalorder %s11, 1
        %s182 = scalar_select %p181, %s11, 1
        %s183 = smul.addr %s182, 128
        %s184 = smul.addr %s183, 4
        %s185 = scalar_lea.vmem %s0, %s184
      $region36: #{tpu_custom_call.1} parent=31 // pred_fallthru
        _
    $region32: #{tpu_custom_call.1} parent=5 // pred_fallthru
      _
    %p186 = scmp.le.s32.totalorder 1, %s11
    %p187 = scmp.lt.s32.totalorder %s11, 3
    %p188 = pnand %p186, %p187
    %p189 = pneg %p188
    // Predicated region
    $region37: #{tpu_custom_call.1} parent=5 // pred_check
      _
    $region38: #{tpu_custom_call.1} parent=5 // pred_check_branch
      %191 = sbr.rel (%p188) target = $region40
    $region39: #{tpu_custom_call.1} parent=5 // pred_region
      %s192 = ssub.s32 %s11, 1
      %p193 = scmp.lt.s32.totalorder %s16, 1
      %s194 = scalar_select %p193, %s16, 1
      %s195 = smul.addr %s194, 128
      %s196 = smul.addr %s195, 4
      %s197 = scalar_lea.vmem %s0, %s196
      %p198 = pneg %p37
      %p199 = pneg %p34
      %p200 = pneg %p58
      %p201 = pneg %p55
      %p202 = pneg %p79
      %p203 = pneg %p76
      %p204 = pneg %p100
      %p205 = pneg %p97
      %p206 = pneg %p121
      %p207 = pneg %p118
      %p208 = pneg %p147
      %p209 = pneg %p144
      %p210 = scmp.lt.s32.totalorder %s16, 1
      %s211 = scalar_select %p210, %s16, 1
      %s212 = smul.addr %s211, 32
      %s213 = smul.addr %s212, 8
      %s214 = scalar_lea.vmem %s5, %s213
      %p215 = scmp.lt.s32.totalorder %s16, 1
      %s216 = scalar_select %p215, %s16, 1
      %s217 = smul.addr %s216, 128
      %s218 = smul.addr %s217, 4
      %s219 = scalar_lea.vmem %s0, %s218
      %p220 = scmp.lt.s32.totalorder %s16, 1
      %s221 = scalar_select %p220, %s16, 1
      %s222 = smul.addr %s221, 32
      %s223 = smul.addr %s222, 8
      %s224 = scalar_lea.vmem %s5, %s223
      %v226 = vld [vmem:[%s1] sm:$0xf]
      %v227 = vld [vmem:[%s1 + $0x4] sm:$0xf]
      %v228 = vld [vmem:[%s1 + $0x8] sm:$0xf]
      %v229 = vld [vmem:[%s1 + $0xc] sm:$0x1]
      %v230 = vld [vmem:[%s219] sm:$0xf]
      %v231 = vld [vmem:[%s219 + $0x4] sm:$0xf]
      %v232 = vld [vmem:[%s219 + $0x8] sm:$0xf]
      %v233 = vld [vmem:[%s219 + $0xc] sm:$0xf]
      %v234 = vld [vmem:[%s219 + $0x10] sm:$0xf]
      %v235 = vld [vmem:[%s219 + $0x14] sm:$0xf]
      %v236 = vld [vmem:[%s219 + $0x18] sm:$0xf]
      %v237 = vld [vmem:[%s219 + $0x1c] sm:$0xf]
      %v238 = vld [vmem:[%s219 + $0x20] sm:$0xf]
      %v239 = vld [vmem:[%s219 + $0x24] sm:$0xf]
      %v240 = vld [vmem:[%s219 + $0x28] sm:$0xf]
      %v241 = vld [vmem:[%s219 + $0x2c] sm:$0xf]
      %v242 = vld [vmem:[%s219 + $0x30] sm:$0xf]
      %v243 = vld [vmem:[%s219 + $0x34] sm:$0xf]
      %v244 = vld [vmem:[%s219 + $0x38] sm:$0xf]
      %v245 = vld [vmem:[%s219 + $0x3c] sm:$0xf]
      %v246 = vld [vmem:[%s219 + $0x40] sm:$0xf]
      %v247 = vld [vmem:[%s219 + $0x44] sm:$0xf]
      %v248 = vld [vmem:[%s219 + $0x48] sm:$0xf]
      %v249 = vld [vmem:[%s219 + $0x4c] sm:$0xf]
      %v250 = vld [vmem:[%s219 + $0x50] sm:$0xf]
      %v251 = vld [vmem:[%s219 + $0x54] sm:$0xf]
      %v252 = vld [vmem:[%s219 + $0x58] sm:$0xf]
      %v253 = vld [vmem:[%s219 + $0x5c] sm:$0xf]
      %v254 = vld [vmem:[%s219 + $0x60] sm:$0xf]
      %v255 = vld [vmem:[%s219 + $0x64] sm:$0xf]
      %v256 = vld [vmem:[%s219 + $0x68] sm:$0xf]
      %v257 = vld [vmem:[%s219 + $0x6c] sm:$0xf]
      %v258 = vld [vmem:[%s219 + $0x70] sm:$0xf]
      %v259 = vld [vmem:[%s219 + $0x74] sm:$0xf]
      %v260 = vld [vmem:[%s219 + $0x78] sm:$0xf]
      %v261 = vld [vmem:[%s219 + $0x7c] sm:$0xf]
      %v294 = vunpack.c.l.b16 %v230
      %v295 = vunpack.c.l.b16 %v231
      %v296 = vunpack.c.l.b16 %v232
      %v297 = vunpack.c.l.b16 %v233
      %v298 = vunpack.c.l.b16 %v234
      %v299 = vunpack.c.l.b16 %v235
      %v300 = vunpack.c.l.b16 %v236
      %v301 = vunpack.c.l.b16 %v237
      %v302 = vunpack.c.l.b16 %v238
      %v303 = vunpack.c.l.b16 %v239
      %v304 = vunpack.c.l.b16 %v240
      %v305 = vunpack.c.l.b16 %v241
      %v306 = vunpack.c.l.b16 %v242
      %v307 = vunpack.c.l.b16 %v243
      %v308 = vunpack.c.l.b16 %v244
      %v309 = vunpack.c.l.b16 %v245
      %v310 = vunpack.c.l.b16 %v246
      %v311 = vunpack.c.l.b16 %v247
      %v312 = vunpack.c.l.b16 %v248
      %v313 = vunpack.c.l.b16 %v249
      %v314 = vunpack.c.l.b16 %v250
      %v315 = vunpack.c.l.b16 %v251
      %v316 = vunpack.c.l.b16 %v252
      %v317 = vunpack.c.l.b16 %v253
      %v318 = vunpack.c.l.b16 %v254
      %v319 = vunpack.c.l.b16 %v255
      %v320 = vunpack.c.l.b16 %v256
      %v321 = vunpack.c.l.b16 %v257
      %v322 = vunpack.c.l.b16 %v258
      %v323 = vunpack.c.l.b16 %v259
      %v324 = vunpack.c.l.b16 %v260
      %v325 = vunpack.c.l.b16 %v261
      %v326 = vpack.c.b16 %v295, %v294
      %v327 = vpack.c.b16 %v297, %v296
      %v328 = vpack.c.b16 %v299, %v298
      %v329 = vpack.c.b16 %v301, %v300
      %v330 = vpack.c.b16 %v303, %v302
      %v331 = vpack.c.b16 %v305, %v304
      %v332 = vpack.c.b16 %v307, %v306
      %v333 = vpack.c.b16 %v309, %v308
      %v334 = vpack.c.b16 %v311, %v310
      %v335 = vpack.c.b16 %v313, %v312
      %v336 = vpack.c.b16 %v315, %v314
      %v337 = vpack.c.b16 %v317, %v316
      %v338 = vpack.c.b16 %v319, %v318
      %v339 = vpack.c.b16 %v321, %v320
      %v340 = vpack.c.b16 %v323, %v322
      %v341 = vpack.c.b16 %v325, %v324
      %v346 = vunpack.c.l.b16 %v226
      %v347 = vunpack.c.l.b16 %v227
      %v348 = vunpack.c.l.b16 %v228
      %v349 = vunpack.c.l.b16 %v229
      %v350 = vpack.c.b16 %v347, %v346
      %v351 = vpack.c.b16 %v349, %v348
      %vm353 = vcmask 203776
      %v355 = vsel %vm353, %v326, 0
      %v358 = vsel %vm353, %v327, 0
      %v361 = vsel %vm353, %v328, 0
      %v364 = vsel %vm353, %v329, 0
      %v367 = vsel %vm353, %v330, 0
      %v370 = vsel %vm353, %v331, 0
      %v373 = vsel %vm353, %v332, 0
      %v376 = vsel %vm353, %v333, 0
      %v379 = vsel %vm353, %v334, 0
      %v382 = vsel %vm353, %v335, 0
      %v385 = vsel %vm353, %v336, 0
      %v388 = vsel %vm353, %v337, 0
      %v391 = vsel %vm353, %v338, 0
      %v394 = vsel %vm353, %v339, 0
      %v397 = vsel %vm353, %v340, 0
      %v400 = vsel %vm353, %v341, 0
      %vm402 = vcmask 1043456
      %vm403 = vcmask 1044480
      %v404 = vsel %vm402, 4294967295, 65535
      %v405 = vsel %vm403, %v404, 0
      %v407 = vand.u32 %v351, %v405
      %409 = vmatpush.bf16.msra.mxu0 0
      %410 = vmatpush.bf16.msra.mxu0 0
      %411 = vmatpush.bf16.msra.mxu0 0
      %412 = vmatpush.bf16.msra.mxu0 0
      %413 = vmatpush.bf16.msra.mxu0 0
      %414 = vmatpush.bf16.msra.mxu0 0
      %415 = vmatpush.bf16.msra.mxu0 %v407
      %416 = vmatpush.bf16.msra.mxu0 %v350
      %417 = vmatmul.bf16.gmra.mxu0 %v355
      %v418 = vpop.f32.mrf.mxu0
      %v419 = vadd.f32 0.0, %v418
      %v420 = vpop.f32.mrf.mxu0
      %v421 = vadd.f32 0.0, %v420
      %422 = vmatmul.bf16.gmra.mxu0 %v358
      %v423 = vpop.f32.mrf.mxu0
      %v424 = vadd.f32 0.0, %v423
      %v425 = vpop.f32.mrf.mxu0
      %v426 = vadd.f32 0.0, %v425
      %427 = vmatmul.bf16.gmra.mxu0 %v361
      %v428 = vpop.f32.mrf.mxu0
      %v429 = vadd.f32 0.0, %v428
      %v430 = vpop.f32.mrf.mxu0
      %v431 = vadd.f32 0.0, %v430
      %432 = vmatmul.bf16.gmra.mxu0 %v364
      %v433 = vpop.f32.mrf.mxu0
      %v434 = vadd.f32 0.0, %v433
      %v435 = vpop.f32.mrf.mxu0
      %v436 = vadd.f32 0.0, %v435
      %437 = vmatmul.bf16.gmra.mxu0 %v367
      %v438 = vpop.f32.mrf.mxu0
      %v439 = vadd.f32 0.0, %v438
      %v440 = vpop.f32.mrf.mxu0
      %v441 = vadd.f32 0.0, %v440
      %442 = vmatmul.bf16.gmra.mxu0 %v370
      %v443 = vpop.f32.mrf.mxu0
      %v444 = vadd.f32 0.0, %v443
      %v445 = vpop.f32.mrf.mxu0
      %v446 = vadd.f32 0.0, %v445
      %447 = vmatmul.bf16.gmra.mxu0 %v373
      %v448 = vpop.f32.mrf.mxu0
      %v449 = vadd.f32 0.0, %v448
      %v450 = vpop.f32.mrf.mxu0
      %v451 = vadd.f32 0.0, %v450
      %452 = vmatmul.bf16.gmra.mxu0 %v376
      %v453 = vpop.f32.mrf.mxu0
      %v454 = vadd.f32 0.0, %v453
      %v455 = vpop.f32.mrf.mxu0
      %v456 = vadd.f32 0.0, %v455
      %457 = vmatmul.bf16.gmra.mxu0 %v379
      %v458 = vpop.f32.mrf.mxu0
      %v459 = vadd.f32 0.0, %v458
      %v460 = vpop.f32.mrf.mxu0
      %v461 = vadd.f32 0.0, %v460
      %462 = vmatmul.bf16.gmra.mxu0 %v382
      %v463 = vpop.f32.mrf.mxu0
      %v464 = vadd.f32 0.0, %v463
      %v465 = vpop.f32.mrf.mxu0
      %v466 = vadd.f32 0.0, %v465
      %467 = vmatmul.bf16.gmra.mxu0 %v385
      %v468 = vpop.f32.mrf.mxu0
      %v469 = vadd.f32 0.0, %v468
      %v470 = vpop.f32.mrf.mxu0
      %v471 = vadd.f32 0.0, %v470
      %472 = vmatmul.bf16.gmra.mxu0 %v388
      %v473 = vpop.f32.mrf.mxu0
      %v474 = vadd.f32 0.0, %v473
      %v475 = vpop.f32.mrf.mxu0
      %v476 = vadd.f32 0.0, %v475
      %477 = vmatmul.bf16.gmra.mxu0 %v391
      %v478 = vpop.f32.mrf.mxu0
      %v479 = vadd.f32 0.0, %v478
      %v480 = vpop.f32.mrf.mxu0
      %v481 = vadd.f32 0.0, %v480
      %482 = vmatmul.bf16.gmra.mxu0 %v394
      %v483 = vpop.f32.mrf.mxu0
      %v484 = vadd.f32 0.0, %v483
      %v485 = vpop.f32.mrf.mxu0
      %v486 = vadd.f32 0.0, %v485
      %487 = vmatmul.bf16.gmra.mxu0 %v397
      %v488 = vpop.f32.mrf.mxu0
      %v489 = vadd.f32 0.0, %v488
      %v490 = vpop.f32.mrf.mxu0
      %v491 = vadd.f32 0.0, %v490
      %492 = vmatmul.bf16.gmra.mxu0 %v400
      %v493 = vpop.f32.mrf.mxu0
      %v494 = vadd.f32 0.0, %v493
      %v495 = vpop.f32.mrf.mxu0
      %v496 = vadd.f32 0.0, %v495
      %497 = vdwg.mxu0
      %s498 = scalar_lea.vmem %s219, 128
      %v499 = vld [vmem:[%s498] sm:$0xf]
      %v500 = vld [vmem:[%s498 + $0x4] sm:$0xf]
      %v501 = vld [vmem:[%s498 + $0x8] sm:$0xf]
      %v502 = vld [vmem:[%s498 + $0xc] sm:$0xf]
      %v503 = vld [vmem:[%s498 + $0x10] sm:$0xf]
      %v504 = vld [vmem:[%s498 + $0x14] sm:$0xf]
      %v505 = vld [vmem:[%s498 + $0x18] sm:$0xf]
      %v506 = vld [vmem:[%s498 + $0x1c] sm:$0xf]
      %v507 = vld [vmem:[%s498 + $0x20] sm:$0xf]
      %v508 = vld [vmem:[%s498 + $0x24] sm:$0xf]
      %v509 = vld [vmem:[%s498 + $0x28] sm:$0xf]
      %v510 = vld [vmem:[%s498 + $0x2c] sm:$0xf]
      %v511 = vld [vmem:[%s498 + $0x30] sm:$0xf]
      %v512 = vld [vmem:[%s498 + $0x34] sm:$0xf]
      %v513 = vld [vmem:[%s498 + $0x38] sm:$0xf]
      %v514 = vld [vmem:[%s498 + $0x3c] sm:$0xf]
      %v515 = vld [vmem:[%s498 + $0x40] sm:$0xf]
      %v516 = vld [vmem:[%s498 + $0x44] sm:$0xf]
      %v517 = vld [vmem:[%s498 + $0x48] sm:$0xf]
      %v518 = vld [vmem:[%s498 + $0x4c] sm:$0xf]
      %v519 = vld [vmem:[%s498 + $0x50] sm:$0xf]
      %v520 = vld [vmem:[%s498 + $0x54] sm:$0xf]
      %v521 = vld [vmem:[%s498 + $0x58] sm:$0xf]
      %v522 = vld [vmem:[%s498 + $0x5c] sm:$0xf]
      %v523 = vld [vmem:[%s498 + $0x60] sm:$0xf]
      %v524 = vld [vmem:[%s498 + $0x64] sm:$0xf]
      %v525 = vld [vmem:[%s498 + $0x68] sm:$0xf]
      %v526 = vld [vmem:[%s498 + $0x6c] sm:$0xf]
      %v527 = vld [vmem:[%s498 + $0x70] sm:$0xf]
      %v528 = vld [vmem:[%s498 + $0x74] sm:$0xf]
      %v529 = vld [vmem:[%s498 + $0x78] sm:$0xf]
      %v530 = vld [vmem:[%s498 + $0x7c] sm:$0xf]
      %v563 = vunpack.c.l.b16 %v499
      %v564 = vunpack.c.l.b16 %v500
      %v565 = vunpack.c.l.b16 %v501
      %v566 = vunpack.c.l.b16 %v502
      %v567 = vunpack.c.l.b16 %v503
      %v568 = vunpack.c.l.b16 %v504
      %v569 = vunpack.c.l.b16 %v505
      %v570 = vunpack.c.l.b16 %v506
      %v571 = vunpack.c.l.b16 %v507
      %v572 = vunpack.c.l.b16 %v508
      %v573 = vunpack.c.l.b16 %v509
      %v574 = vunpack.c.l.b16 %v510
      %v575 = vunpack.c.l.b16 %v511
      %v576 = vunpack.c.l.b16 %v512
      %v577 = vunpack.c.l.b16 %v513
      %v578 = vunpack.c.l.b16 %v514
      %v579 = vunpack.c.l.b16 %v515
      %v580 = vunpack.c.l.b16 %v516
      %v581 = vunpack.c.l.b16 %v517
      %v582 = vunpack.c.l.b16 %v518
      %v583 = vunpack.c.l.b16 %v519
      %v584 = vunpack.c.l.b16 %v520
      %v585 = vunpack.c.l.b16 %v521
      %v586 = vunpack.c.l.b16 %v522
      %v587 = vunpack.c.l.b16 %v523
      %v588 = vunpack.c.l.b16 %v524
      %v589 = vunpack.c.l.b16 %v525
      %v590 = vunpack.c.l.b16 %v526
      %v591 = vunpack.c.l.b16 %v527
      %v592 = vunpack.c.l.b16 %v528
      %v593 = vunpack.c.l.b16 %v529
      %v594 = vunpack.c.l.b16 %v530
      %v595 = vpack.c.b16 %v564, %v563
      %v596 = vpack.c.b16 %v566, %v565
      %v597 = vpack.c.b16 %v568, %v567
      %v598 = vpack.c.b16 %v570, %v569
      %v599 = vpack.c.b16 %v572, %v571
      %v600 = vpack.c.b16 %v574, %v573
      %v601 = vpack.c.b16 %v576, %v575
      %v602 = vpack.c.b16 %v578, %v577
      %v603 = vpack.c.b16 %v580, %v579
      %v604 = vpack.c.b16 %v582, %v581
      %v605 = vpack.c.b16 %v584, %v583
      %v606 = vpack.c.b16 %v586, %v585
      %v607 = vpack.c.b16 %v588, %v587
      %v608 = vpack.c.b16 %v590, %v589
      %v609 = vpack.c.b16 %v592, %v591
      %v610 = vpack.c.b16 %v594, %v593
      %v612 = vsel %vm353, %v595, 0
      %v615 = vsel %vm353, %v596, 0
      %v618 = vsel %vm353, %v597, 0
      %v621 = vsel %vm353, %v598, 0
      %v624 = vsel %vm353, %v599, 0
      %v627 = vsel %vm353, %v600, 0
      %v630 = vsel %vm353, %v601, 0
      %v633 = vsel %vm353, %v602, 0
      %v636 = vsel %vm353, %v603, 0
      %v639 = vsel %vm353, %v604, 0
      %v642 = vsel %vm353, %v605, 0
      %v645 = vsel %vm353, %v606, 0
      %v648 = vsel %vm353, %v607, 0
      %v651 = vsel %vm353, %v608, 0
      %v654 = vsel %vm353, %v609, 0
      %v657 = vsel %vm353, %v610, 0
      %659 = vmatpush.bf16.msra.mxu0 0
      %660 = vmatpush.bf16.msra.mxu0 0
      %661 = vmatpush.bf16.msra.mxu0 0
      %662 = vmatpush.bf16.msra.mxu0 0
      %663 = vmatpush.bf16.msra.mxu0 0
      %664 = vmatpush.bf16.msra.mxu0 0
      %665 = vmatpush.bf16.msra.mxu0 %v407
      %666 = vmatpush.bf16.msra.mxu0 %v350
      %667 = vmatmul.bf16.gmra.mxu0 %v612
      %v668 = vpop.f32.mrf.mxu0
      %v669 = vadd.f32 0.0, %v668
      %v670 = vpop.f32.mrf.mxu0
      %v671 = vadd.f32 0.0, %v670
      %672 = vmatmul.bf16.gmra.mxu0 %v615
      %v673 = vpop.f32.mrf.mxu0
      %v674 = vadd.f32 0.0, %v673
      %v675 = vpop.f32.mrf.mxu0
      %v676 = vadd.f32 0.0, %v675
      %677 = vmatmul.bf16.gmra.mxu0 %v618
      %v678 = vpop.f32.mrf.mxu0
      %v679 = vadd.f32 0.0, %v678
      %v680 = vpop.f32.mrf.mxu0
      %v681 = vadd.f32 0.0, %v680
      %682 = vmatmul.bf16.gmra.mxu0 %v621
      %v683 = vpop.f32.mrf.mxu0
      %v684 = vadd.f32 0.0, %v683
      %v685 = vpop.f32.mrf.mxu0
      %v686 = vadd.f32 0.0, %v685
      %687 = vmatmul.bf16.gmra.mxu0 %v624
      %v688 = vpop.f32.mrf.mxu0
      %v689 = vadd.f32 0.0, %v688
      %v690 = vpop.f32.mrf.mxu0
      %v691 = vadd.f32 0.0, %v690
      %692 = vmatmul.bf16.gmra.mxu0 %v627
      %v693 = vpop.f32.mrf.mxu0
      %v694 = vadd.f32 0.0, %v693
      %v695 = vpop.f32.mrf.mxu0
      %v696 = vadd.f32 0.0, %v695
      %697 = vmatmul.bf16.gmra.mxu0 %v630
      %v698 = vpop.f32.mrf.mxu0
      %v699 = vadd.f32 0.0, %v698
      %v700 = vpop.f32.mrf.mxu0
      %v701 = vadd.f32 0.0, %v700
      %702 = vmatmul.bf16.gmra.mxu0 %v633
      %v703 = vpop.f32.mrf.mxu0
      %v704 = vadd.f32 0.0, %v703
      %v705 = vpop.f32.mrf.mxu0
      %v706 = vadd.f32 0.0, %v705
      %707 = vmatmul.bf16.gmra.mxu0 %v636
      %v708 = vpop.f32.mrf.mxu0
      %v709 = vadd.f32 0.0, %v708
      %v710 = vpop.f32.mrf.mxu0
      %v711 = vadd.f32 0.0, %v710
      %712 = vmatmul.bf16.gmra.mxu0 %v639
      %v713 = vpop.f32.mrf.mxu0
      %v714 = vadd.f32 0.0, %v713
      %v715 = vpop.f32.mrf.mxu0
      %v716 = vadd.f32 0.0, %v715
      %717 = vmatmul.bf16.gmra.mxu0 %v642
      %v718 = vpop.f32.mrf.mxu0
      %v719 = vadd.f32 0.0, %v718
      %v720 = vpop.f32.mrf.mxu0
      %v721 = vadd.f32 0.0, %v720
      %722 = vmatmul.bf16.gmra.mxu0 %v645
      %v723 = vpop.f32.mrf.mxu0
      %v724 = vadd.f32 0.0, %v723
      %v725 = vpop.f32.mrf.mxu0
      %v726 = vadd.f32 0.0, %v725
      %727 = vmatmul.bf16.gmra.mxu0 %v648
      %v728 = vpop.f32.mrf.mxu0
      %v729 = vadd.f32 0.0, %v728
      %v730 = vpop.f32.mrf.mxu0
      %v731 = vadd.f32 0.0, %v730
      %732 = vmatmul.bf16.gmra.mxu0 %v651
      %v733 = vpop.f32.mrf.mxu0
      %v734 = vadd.f32 0.0, %v733
      %v735 = vpop.f32.mrf.mxu0
      %v736 = vadd.f32 0.0, %v735
      %737 = vmatmul.bf16.gmra.mxu0 %v654
      %v738 = vpop.f32.mrf.mxu0
      %v739 = vadd.f32 0.0, %v738
      %v740 = vpop.f32.mrf.mxu0
      %v741 = vadd.f32 0.0, %v740
      %742 = vmatmul.bf16.gmra.mxu0 %v657
      %v743 = vpop.f32.mrf.mxu0
      %v744 = vadd.f32 0.0, %v743
      %v745 = vpop.f32.mrf.mxu0
      %v746 = vadd.f32 0.0, %v745
      %747 = vdwg.mxu0
      %v748 = vmax.f32 %v419, %v669
      %v749 = vmax.f32 %v421, %v671
      %v750 = vmax.f32 %v424, %v674
      %v751 = vmax.f32 %v426, %v676
      %v752 = vmax.f32 %v429, %v679
      %v753 = vmax.f32 %v431, %v681
      %v754 = vmax.f32 %v434, %v684
      %v755 = vmax.f32 %v436, %v686
      %v756 = vmax.f32 %v439, %v689
      %v757 = vmax.f32 %v441, %v691
      %v758 = vmax.f32 %v444, %v694
      %v759 = vmax.f32 %v446, %v696
      %v760 = vmax.f32 %v449, %v699
      %v761 = vmax.f32 %v451, %v701
      %v762 = vmax.f32 %v454, %v704
      %v763 = vmax.f32 %v456, %v706
      %v764 = vmax.f32 %v459, %v709
      %v765 = vmax.f32 %v461, %v711
      %v766 = vmax.f32 %v464, %v714
      %v767 = vmax.f32 %v466, %v716
      %v768 = vmax.f32 %v469, %v719
      %v769 = vmax.f32 %v471, %v721
      %v770 = vmax.f32 %v474, %v724
      %v771 = vmax.f32 %v476, %v726
      %v772 = vmax.f32 %v479, %v729
      %v773 = vmax.f32 %v481, %v731
      %v774 = vmax.f32 %v484, %v734
      %v775 = vmax.f32 %v486, %v736
      %v776 = vmax.f32 %v489, %v739
      %v777 = vmax.f32 %v491, %v741
      %v778 = vmax.f32 %v494, %v744
      %v779 = vmax.f32 %v496, %v746
      %s780 = scalar_lea.vmem %s219, 256
      %v781 = vld [vmem:[%s780] sm:$0xf]
      %v782 = vld [vmem:[%s780 + $0x4] sm:$0xf]
      %v783 = vld [vmem:[%s780 + $0x8] sm:$0xf]
      %v784 = vld [vmem:[%s780 + $0xc] sm:$0xf]
      %v785 = vld [vmem:[%s780 + $0x10] sm:$0xf]
      %v786 = vld [vmem:[%s780 + $0x14] sm:$0xf]
      %v787 = vld [vmem:[%s780 + $0x18] sm:$0xf]
      %v788 = vld [vmem:[%s780 + $0x1c] sm:$0xf]
      %v789 = vld [vmem:[%s780 + $0x20] sm:$0xf]
      %v790 = vld [vmem:[%s780 + $0x24] sm:$0xf]
      %v791 = vld [vmem:[%s780 + $0x28] sm:$0xf]
      %v792 = vld [vmem:[%s780 + $0x2c] sm:$0xf]
      %v793 = vld [vmem:[%s780 + $0x30] sm:$0xf]
      %v794 = vld [vmem:[%s780 + $0x34] sm:$0xf]
      %v795 = vld [vmem:[%s780 + $0x38] sm:$0xf]
      %v796 = vld [vmem:[%s780 + $0x3c] sm:$0xf]
      %v797 = vld [vmem:[%s780 + $0x40] sm:$0xf]
      %v798 = vld [vmem:[%s780 + $0x44] sm:$0xf]
      %v799 = vld [vmem:[%s780 + $0x48] sm:$0xf]
      %v800 = vld [vmem:[%s780 + $0x4c] sm:$0xf]
      %v801 = vld [vmem:[%s780 + $0x50] sm:$0xf]
      %v802 = vld [vmem:[%s780 + $0x54] sm:$0xf]
      %v803 = vld [vmem:[%s780 + $0x58] sm:$0xf]
      %v804 = vld [vmem:[%s780 + $0x5c] sm:$0xf]
      %v805 = vld [vmem:[%s780 + $0x60] sm:$0xf]
      %v806 = vld [vmem:[%s780 + $0x64] sm:$0xf]
      %v807 = vld [vmem:[%s780 + $0x68] sm:$0xf]
      %v808 = vld [vmem:[%s780 + $0x6c] sm:$0xf]
      %v809 = vld [vmem:[%s780 + $0x70] sm:$0xf]
      %v810 = vld [vmem:[%s780 + $0x74] sm:$0xf]
      %v811 = vld [vmem:[%s780 + $0x78] sm:$0xf]
      %v812 = vld [vmem:[%s780 + $0x7c] sm:$0xf]
      %v845 = vunpack.c.l.b16 %v781
      %v846 = vunpack.c.l.b16 %v782
      %v847 = vunpack.c.l.b16 %v783
      %v848 = vunpack.c.l.b16 %v784
      %v849 = vunpack.c.l.b16 %v785
      %v850 = vunpack.c.l.b16 %v786
      %v851 = vunpack.c.l.b16 %v787
      %v852 = vunpack.c.l.b16 %v788
      %v853 = vunpack.c.l.b16 %v789
      %v854 = vunpack.c.l.b16 %v790
      %v855 = vunpack.c.l.b16 %v791
      %v856 = vunpack.c.l.b16 %v792
      %v857 = vunpack.c.l.b16 %v793
      %v858 = vunpack.c.l.b16 %v794
      %v859 = vunpack.c.l.b16 %v795
      %v860 = vunpack.c.l.b16 %v796
      %v861 = vunpack.c.l.b16 %v797
      %v862 = vunpack.c.l.b16 %v798
      %v863 = vunpack.c.l.b16 %v799
      %v864 = vunpack.c.l.b16 %v800
      %v865 = vunpack.c.l.b16 %v801
      %v866 = vunpack.c.l.b16 %v802
      %v867 = vunpack.c.l.b16 %v803
      %v868 = vunpack.c.l.b16 %v804
      %v869 = vunpack.c.l.b16 %v805
      %v870 = vunpack.c.l.b16 %v806
      %v871 = vunpack.c.l.b16 %v807
      %v872 = vunpack.c.l.b16 %v808
      %v873 = vunpack.c.l.b16 %v809
      %v874 = vunpack.c.l.b16 %v810
      %v875 = vunpack.c.l.b16 %v811
      %v876 = vunpack.c.l.b16 %v812
      %v877 = vpack.c.b16 %v846, %v845
      %v878 = vpack.c.b16 %v848, %v847
      %v879 = vpack.c.b16 %v850, %v849
      %v880 = vpack.c.b16 %v852, %v851
      %v881 = vpack.c.b16 %v854, %v853
      %v882 = vpack.c.b16 %v856, %v855
      %v883 = vpack.c.b16 %v858, %v857
      %v884 = vpack.c.b16 %v860, %v859
      %v885 = vpack.c.b16 %v862, %v861
      %v886 = vpack.c.b16 %v864, %v863
      %v887 = vpack.c.b16 %v866, %v865
      %v888 = vpack.c.b16 %v868, %v867
      %v889 = vpack.c.b16 %v870, %v869
      %v890 = vpack.c.b16 %v872, %v871
      %v891 = vpack.c.b16 %v874, %v873
      %v892 = vpack.c.b16 %v876, %v875
      %v894 = vsel %vm353, %v877, 0
      %v897 = vsel %vm353, %v878, 0
      %v900 = vsel %vm353, %v879, 0
      %v903 = vsel %vm353, %v880, 0
      %v906 = vsel %vm353, %v881, 0
      %v909 = vsel %vm353, %v882, 0
      %v912 = vsel %vm353, %v883, 0
      %v915 = vsel %vm353, %v884, 0
      %v918 = vsel %vm353, %v885, 0
      %v921 = vsel %vm353, %v886, 0
      %v924 = vsel %vm353, %v887, 0
      %v927 = vsel %vm353, %v888, 0
      %v930 = vsel %vm353, %v889, 0
      %v933 = vsel %vm353, %v890, 0
      %v936 = vsel %vm353, %v891, 0
      %v939 = vsel %vm353, %v892, 0
      %941 = vmatpush.bf16.msra.mxu0 0
      %942 = vmatpush.bf16.msra.mxu0 0
      %943 = vmatpush.bf16.msra.mxu0 0
      %944 = vmatpush.bf16.msra.mxu0 0
      %945 = vmatpush.bf16.msra.mxu0 0
      %946 = vmatpush.bf16.msra.mxu0 0
      %947 = vmatpush.bf16.msra.mxu0 %v407
      %948 = vmatpush.bf16.msra.mxu0 %v350
      %949 = vmatmul.bf16.gmra.mxu0 %v894
      %v950 = vpop.f32.mrf.mxu0
      %v951 = vadd.f32 0.0, %v950
      %v952 = vpop.f32.mrf.mxu0
      %v953 = vadd.f32 0.0, %v952
      %954 = vmatmul.bf16.gmra.mxu0 %v897
      %v955 = vpop.f32.mrf.mxu0
      %v956 = vadd.f32 0.0, %v955
      %v957 = vpop.f32.mrf.mxu0
      %v958 = vadd.f32 0.0, %v957
      %959 = vmatmul.bf16.gmra.mxu0 %v900
      %v960 = vpop.f32.mrf.mxu0
      %v961 = vadd.f32 0.0, %v960
      %v962 = vpop.f32.mrf.mxu0
      %v963 = vadd.f32 0.0, %v962
      %964 = vmatmul.bf16.gmra.mxu0 %v903
      %v965 = vpop.f32.mrf.mxu0
      %v966 = vadd.f32 0.0, %v965
      %v967 = vpop.f32.mrf.mxu0
      %v968 = vadd.f32 0.0, %v967
      %969 = vmatmul.bf16.gmra.mxu0 %v906
      %v970 = vpop.f32.mrf.mxu0
      %v971 = vadd.f32 0.0, %v970
      %v972 = vpop.f32.mrf.mxu0
      %v973 = vadd.f32 0.0, %v972
      %974 = vmatmul.bf16.gmra.mxu0 %v909
      %v975 = vpop.f32.mrf.mxu0
      %v976 = vadd.f32 0.0, %v975
      %v977 = vpop.f32.mrf.mxu0
      %v978 = vadd.f32 0.0, %v977
      %979 = vmatmul.bf16.gmra.mxu0 %v912
      %v980 = vpop.f32.mrf.mxu0
      %v981 = vadd.f32 0.0, %v980
      %v982 = vpop.f32.mrf.mxu0
      %v983 = vadd.f32 0.0, %v982
      %984 = vmatmul.bf16.gmra.mxu0 %v915
      %v985 = vpop.f32.mrf.mxu0
      %v986 = vadd.f32 0.0, %v985
      %v987 = vpop.f32.mrf.mxu0
      %v988 = vadd.f32 0.0, %v987
      %989 = vmatmul.bf16.gmra.mxu0 %v918
      %v990 = vpop.f32.mrf.mxu0
      %v991 = vadd.f32 0.0, %v990
      %v992 = vpop.f32.mrf.mxu0
      %v993 = vadd.f32 0.0, %v992
      %994 = vmatmul.bf16.gmra.mxu0 %v921
      %v995 = vpop.f32.mrf.mxu0
      %v996 = vadd.f32 0.0, %v995
      %v997 = vpop.f32.mrf.mxu0
      %v998 = vadd.f32 0.0, %v997
      %999 = vmatmul.bf16.gmra.mxu0 %v924
      %v1000 = vpop.f32.mrf.mxu0
      %v1001 = vadd.f32 0.0, %v1000
      %v1002 = vpop.f32.mrf.mxu0
      %v1003 = vadd.f32 0.0, %v1002
      %1004 = vmatmul.bf16.gmra.mxu0 %v927
      %v1005 = vpop.f32.mrf.mxu0
      %v1006 = vadd.f32 0.0, %v1005
      %v1007 = vpop.f32.mrf.mxu0
      %v1008 = vadd.f32 0.0, %v1007
      %1009 = vmatmul.bf16.gmra.mxu0 %v930
      %v1010 = vpop.f32.mrf.mxu0
      %v1011 = vadd.f32 0.0, %v1010
      %v1012 = vpop.f32.mrf.mxu0
      %v1013 = vadd.f32 0.0, %v1012
      %1014 = vmatmul.bf16.gmra.mxu0 %v933
      %v1015 = vpop.f32.mrf.mxu0
      %v1016 = vadd.f32 0.0, %v1015
      %v1017 = vpop.f32.mrf.mxu0
      %v1018 = vadd.f32 0.0, %v1017
      %1019 = vmatmul.bf16.gmra.mxu0 %v936
      %v1020 = vpop.f32.mrf.mxu0
      %v1021 = vadd.f32 0.0, %v1020
      %v1022 = vpop.f32.mrf.mxu0
      %v1023 = vadd.f32 0.0, %v1022
      %1024 = vmatmul.bf16.gmra.mxu0 %v939
      %v1025 = vpop.f32.mrf.mxu0
      %v1026 = vadd.f32 0.0, %v1025
      %v1027 = vpop.f32.mrf.mxu0
      %v1028 = vadd.f32 0.0, %v1027
      %1029 = vdwg.mxu0
      %v1030 = vmax.f32 %v748, %v951
      %v1031 = vmax.f32 %v749, %v953
      %v1032 = vmax.f32 %v750, %v956
      %v1033 = vmax.f32 %v751, %v958
      %v1034 = vmax.f32 %v752, %v961
      %v1035 = vmax.f32 %v753, %v963
      %v1036 = vmax.f32 %v754, %v966
      %v1037 = vmax.f32 %v755, %v968
      %v1038 = vmax.f32 %v756, %v971
      %v1039 = vmax.f32 %v757, %v973
      %v1040 = vmax.f32 %v758, %v976
      %v1041 = vmax.f32 %v759, %v978
      %v1042 = vmax.f32 %v760, %v981
      %v1043 = vmax.f32 %v761, %v983
      %v1044 = vmax.f32 %v762, %v986
      %v1045 = vmax.f32 %v763, %v988
      %v1046 = vmax.f32 %v764, %v991
      %v1047 = vmax.f32 %v765, %v993
      %v1048 = vmax.f32 %v766, %v996
      %v1049 = vmax.f32 %v767, %v998
      %v1050 = vmax.f32 %v768, %v1001
      %v1051 = vmax.f32 %v769, %v1003
      %v1052 = vmax.f32 %v770, %v1006
      %v1053 = vmax.f32 %v771, %v1008
      %v1054 = vmax.f32 %v772, %v1011
      %v1055 = vmax.f32 %v773, %v1013
      %v1056 = vmax.f32 %v774, %v1016
      %v1057 = vmax.f32 %v775, %v1018
      %v1058 = vmax.f32 %v776, %v1021
      %v1059 = vmax.f32 %v777, %v1023
      %v1060 = vmax.f32 %v778, %v1026
      %v1061 = vmax.f32 %v779, %v1028
      %s1062 = scalar_lea.vmem %s219, 384
      %v1063 = vld [vmem:[%s1062] sm:$0xf]
      %v1064 = vld [vmem:[%s1062 + $0x4] sm:$0xf]
      %v1065 = vld [vmem:[%s1062 + $0x8] sm:$0xf]
      %v1066 = vld [vmem:[%s1062 + $0xc] sm:$0xf]
      %v1067 = vld [vmem:[%s1062 + $0x10] sm:$0xf]
      %v1068 = vld [vmem:[%s1062 + $0x14] sm:$0xf]
      %v1069 = vld [vmem:[%s1062 + $0x18] sm:$0xf]
      %v1070 = vld [vmem:[%s1062 + $0x1c] sm:$0xf]
      %v1071 = vld [vmem:[%s1062 + $0x20] sm:$0xf]
      %v1072 = vld [vmem:[%s1062 + $0x24] sm:$0xf]
      %v1073 = vld [vmem:[%s1062 + $0x28] sm:$0xf]
      %v1074 = vld [vmem:[%s1062 + $0x2c] sm:$0xf]
      %v1075 = vld [vmem:[%s1062 + $0x30] sm:$0xf]
      %v1076 = vld [vmem:[%s1062 + $0x34] sm:$0xf]
      %v1077 = vld [vmem:[%s1062 + $0x38] sm:$0xf]
      %v1078 = vld [vmem:[%s1062 + $0x3c] sm:$0xf]
      %v1079 = vld [vmem:[%s1062 + $0x40] sm:$0xf]
      %v1080 = vld [vmem:[%s1062 + $0x44] sm:$0xf]
      %v1081 = vld [vmem:[%s1062 + $0x48] sm:$0xf]
      %v1082 = vld [vmem:[%s1062 + $0x4c] sm:$0xf]
      %v1083 = vld [vmem:[%s1062 + $0x50] sm:$0xf]
      %v1084 = vld [vmem:[%s1062 + $0x54] sm:$0xf]
      %v1085 = vld [vmem:[%s1062 + $0x58] sm:$0xf]
      %v1086 = vld [vmem:[%s1062 + $0x5c] sm:$0xf]
      %v1087 = vld [vmem:[%s1062 + $0x60] sm:$0xf]
      %v1088 = vld [vmem:[%s1062 + $0x64] sm:$0xf]
      %v1089 = vld [vmem:[%s1062 + $0x68] sm:$0xf]
      %v1090 = vld [vmem:[%s1062 + $0x6c] sm:$0xf]
      %v1091 = vld [vmem:[%s1062 + $0x70] sm:$0xf]
      %v1092 = vld [vmem:[%s1062 + $0x74] sm:$0xf]
      %v1093 = vld [vmem:[%s1062 + $0x78] sm:$0xf]
      %v1094 = vld [vmem:[%s1062 + $0x7c] sm:$0xf]
      %v1127 = vunpack.c.l.b16 %v1063
      %v1128 = vunpack.c.l.b16 %v1064
      %v1129 = vunpack.c.l.b16 %v1065
      %v1130 = vunpack.c.l.b16 %v1066
      %v1131 = vunpack.c.l.b16 %v1067
      %v1132 = vunpack.c.l.b16 %v1068
      %v1133 = vunpack.c.l.b16 %v1069
      %v1134 = vunpack.c.l.b16 %v1070
      %v1135 = vunpack.c.l.b16 %v1071
      %v1136 = vunpack.c.l.b16 %v1072
      %v1137 = vunpack.c.l.b16 %v1073
      %v1138 = vunpack.c.l.b16 %v1074
      %v1139 = vunpack.c.l.b16 %v1075
      %v1140 = vunpack.c.l.b16 %v1076
      %v1141 = vunpack.c.l.b16 %v1077
      %v1142 = vunpack.c.l.b16 %v1078
      %v1143 = vunpack.c.l.b16 %v1079
      %v1144 = vunpack.c.l.b16 %v1080
      %v1145 = vunpack.c.l.b16 %v1081
      %v1146 = vunpack.c.l.b16 %v1082
      %v1147 = vunpack.c.l.b16 %v1083
      %v1148 = vunpack.c.l.b16 %v1084
      %v1149 = vunpack.c.l.b16 %v1085
      %v1150 = vunpack.c.l.b16 %v1086
      %v1151 = vunpack.c.l.b16 %v1087
      %v1152 = vunpack.c.l.b16 %v1088
      %v1153 = vunpack.c.l.b16 %v1089
      %v1154 = vunpack.c.l.b16 %v1090
      %v1155 = vunpack.c.l.b16 %v1091
      %v1156 = vunpack.c.l.b16 %v1092
      %v1157 = vunpack.c.l.b16 %v1093
      %v1158 = vunpack.c.l.b16 %v1094
      %v1159 = vpack.c.b16 %v1128, %v1127
      %v1160 = vpack.c.b16 %v1130, %v1129
      %v1161 = vpack.c.b16 %v1132, %v1131
      %v1162 = vpack.c.b16 %v1134, %v1133
      %v1163 = vpack.c.b16 %v1136, %v1135
      %v1164 = vpack.c.b16 %v1138, %v1137
      %v1165 = vpack.c.b16 %v1140, %v1139
      %v1166 = vpack.c.b16 %v1142, %v1141
      %v1167 = vpack.c.b16 %v1144, %v1143
      %v1168 = vpack.c.b16 %v1146, %v1145
      %v1169 = vpack.c.b16 %v1148, %v1147
      %v1170 = vpack.c.b16 %v1150, %v1149
      %v1171 = vpack.c.b16 %v1152, %v1151
      %v1172 = vpack.c.b16 %v1154, %v1153
      %v1173 = vpack.c.b16 %v1156, %v1155
      %v1174 = vpack.c.b16 %v1158, %v1157
      %v1176 = vsel %vm353, %v1159, 0
      %v1179 = vsel %vm353, %v1160, 0
      %v1182 = vsel %vm353, %v1161, 0
      %v1185 = vsel %vm353, %v1162, 0
      %v1188 = vsel %vm353, %v1163, 0
      %v1191 = vsel %vm353, %v1164, 0
      %v1194 = vsel %vm353, %v1165, 0
      %v1197 = vsel %vm353, %v1166, 0
      %v1200 = vsel %vm353, %v1167, 0
      %v1203 = vsel %vm353, %v1168, 0
      %v1206 = vsel %vm353, %v1169, 0
      %v1209 = vsel %vm353, %v1170, 0
      %v1212 = vsel %vm353, %v1171, 0
      %v1215 = vsel %vm353, %v1172, 0
      %v1218 = vsel %vm353, %v1173, 0
      %v1221 = vsel %vm353, %v1174, 0
      %1223 = vmatpush.bf16.msra.mxu0 0
      %1224 = vmatpush.bf16.msra.mxu0 0
      %1225 = vmatpush.bf16.msra.mxu0 0
      %1226 = vmatpush.bf16.msra.mxu0 0
      %1227 = vmatpush.bf16.msra.mxu0 0
      %1228 = vmatpush.bf16.msra.mxu0 0
      %1229 = vmatpush.bf16.msra.mxu0 %v407
      %1230 = vmatpush.bf16.msra.mxu0 %v350
      %1231 = vmatmul.bf16.gmra.mxu0 %v1176
      %v1232 = vpop.f32.mrf.mxu0
      %v1233 = vadd.f32 0.0, %v1232
      %v1234 = vpop.f32.mrf.mxu0
      %v1235 = vadd.f32 0.0, %v1234
      %1236 = vmatmul.bf16.gmra.mxu0 %v1179
      %v1237 = vpop.f32.mrf.mxu0
      %v1238 = vadd.f32 0.0, %v1237
      %v1239 = vpop.f32.mrf.mxu0
      %v1240 = vadd.f32 0.0, %v1239
      %1241 = vmatmul.bf16.gmra.mxu0 %v1182
      %v1242 = vpop.f32.mrf.mxu0
      %v1243 = vadd.f32 0.0, %v1242
      %v1244 = vpop.f32.mrf.mxu0
      %v1245 = vadd.f32 0.0, %v1244
      %1246 = vmatmul.bf16.gmra.mxu0 %v1185
      %v1247 = vpop.f32.mrf.mxu0
      %v1248 = vadd.f32 0.0, %v1247
      %v1249 = vpop.f32.mrf.mxu0
      %v1250 = vadd.f32 0.0, %v1249
      %1251 = vmatmul.bf16.gmra.mxu0 %v1188
      %v1252 = vpop.f32.mrf.mxu0
      %v1253 = vadd.f32 0.0, %v1252
      %v1254 = vpop.f32.mrf.mxu0
      %v1255 = vadd.f32 0.0, %v1254
      %1256 = vmatmul.bf16.gmra.mxu0 %v1191
      %v1257 = vpop.f32.mrf.mxu0
      %v1258 = vadd.f32 0.0, %v1257
      %v1259 = vpop.f32.mrf.mxu0
      %v1260 = vadd.f32 0.0, %v1259
      %1261 = vmatmul.bf16.gmra.mxu0 %v1194
      %v1262 = vpop.f32.mrf.mxu0
      %v1263 = vadd.f32 0.0, %v1262
      %v1264 = vpop.f32.mrf.mxu0
      %v1265 = vadd.f32 0.0, %v1264
      %1266 = vmatmul.bf16.gmra.mxu0 %v1197
      %v1267 = vpop.f32.mrf.mxu0
      %v1268 = vadd.f32 0.0, %v1267
      %v1269 = vpop.f32.mrf.mxu0
      %v1270 = vadd.f32 0.0, %v1269
      %1271 = vmatmul.bf16.gmra.mxu0 %v1200
      %v1272 = vpop.f32.mrf.mxu0
      %v1273 = vadd.f32 0.0, %v1272
      %v1274 = vpop.f32.mrf.mxu0
      %v1275 = vadd.f32 0.0, %v1274
      %1276 = vmatmul.bf16.gmra.mxu0 %v1203
      %v1277 = vpop.f32.mrf.mxu0
      %v1278 = vadd.f32 0.0, %v1277
      %v1279 = vpop.f32.mrf.mxu0
      %v1280 = vadd.f32 0.0, %v1279
      %1281 = vmatmul.bf16.gmra.mxu0 %v1206
      %v1282 = vpop.f32.mrf.mxu0
      %v1283 = vadd.f32 0.0, %v1282
      %v1284 = vpop.f32.mrf.mxu0
      %v1285 = vadd.f32 0.0, %v1284
      %1286 = vmatmul.bf16.gmra.mxu0 %v1209
      %v1287 = vpop.f32.mrf.mxu0
      %v1288 = vadd.f32 0.0, %v1287
      %v1289 = vpop.f32.mrf.mxu0
      %v1290 = vadd.f32 0.0, %v1289
      %1291 = vmatmul.bf16.gmra.mxu0 %v1212
      %v1292 = vpop.f32.mrf.mxu0
      %v1293 = vadd.f32 0.0, %v1292
      %v1294 = vpop.f32.mrf.mxu0
      %v1295 = vadd.f32 0.0, %v1294
      %1296 = vmatmul.bf16.gmra.mxu0 %v1215
      %v1297 = vpop.f32.mrf.mxu0
      %v1298 = vadd.f32 0.0, %v1297
      %v1299 = vpop.f32.mrf.mxu0
      %v1300 = vadd.f32 0.0, %v1299
      %1301 = vmatmul.bf16.gmra.mxu0 %v1218
      %v1302 = vpop.f32.mrf.mxu0
      %v1303 = vadd.f32 0.0, %v1302
      %v1304 = vpop.f32.mrf.mxu0
      %v1305 = vadd.f32 0.0, %v1304
      %1306 = vmatmul.bf16.gmra.mxu0 %v1221
      %v1307 = vpop.f32.mrf.mxu0
      %v1308 = vadd.f32 0.0, %v1307
      %v1309 = vpop.f32.mrf.mxu0
      %v1310 = vadd.f32 0.0, %v1309
      %1311 = vdwg.mxu0
      %v1312 = vmax.f32 %v1030, %v1233
      %v1313 = vmax.f32 %v1031, %v1235
      %v1314 = vmax.f32 %v1032, %v1238
      %v1315 = vmax.f32 %v1033, %v1240
      %v1316 = vmax.f32 %v1034, %v1243
      %v1317 = vmax.f32 %v1035, %v1245
      %v1318 = vmax.f32 %v1036, %v1248
      %v1319 = vmax.f32 %v1037, %v1250
      %v1320 = vmax.f32 %v1038, %v1253
      %v1321 = vmax.f32 %v1039, %v1255
      %v1322 = vmax.f32 %v1040, %v1258
      %v1323 = vmax.f32 %v1041, %v1260
      %v1324 = vmax.f32 %v1042, %v1263
      %v1325 = vmax.f32 %v1043, %v1265
      %v1326 = vmax.f32 %v1044, %v1268
      %v1327 = vmax.f32 %v1045, %v1270
      %v1328 = vmax.f32 %v1046, %v1273
      %v1329 = vmax.f32 %v1047, %v1275
      %v1330 = vmax.f32 %v1048, %v1278
      %v1331 = vmax.f32 %v1049, %v1280
      %v1332 = vmax.f32 %v1050, %v1283
      %v1333 = vmax.f32 %v1051, %v1285
      %v1334 = vmax.f32 %v1052, %v1288
      %v1335 = vmax.f32 %v1053, %v1290
      %v1336 = vmax.f32 %v1054, %v1293
      %v1337 = vmax.f32 %v1055, %v1295
      %v1338 = vmax.f32 %v1056, %v1298
      %v1339 = vmax.f32 %v1057, %v1300
      %v1340 = vmax.f32 %v1058, %v1303
      %v1341 = vmax.f32 %v1059, %v1305
      %v1342 = vmax.f32 %v1060, %v1308
      %v1343 = vmax.f32 %v1061, %v1310
      %v1344 = vld [vmem:[%s2] sm:$0x1]
      %v1346 = vperm.slane %v1344, 0
      %v1348 = vadd.f32 %v1312, %v1346
      %v1349 = vadd.f32 %v1313, %v1346
      %v1350 = vadd.f32 %v1314, %v1346
      %v1351 = vadd.f32 %v1315, %v1346
      %v1352 = vadd.f32 %v1316, %v1346
      %v1353 = vadd.f32 %v1317, %v1346
      %v1354 = vadd.f32 %v1318, %v1346
      %v1355 = vadd.f32 %v1319, %v1346
      %v1356 = vadd.f32 %v1320, %v1346
      %v1357 = vadd.f32 %v1321, %v1346
      %v1358 = vadd.f32 %v1322, %v1346
      %v1359 = vadd.f32 %v1323, %v1346
      %v1360 = vadd.f32 %v1324, %v1346
      %v1361 = vadd.f32 %v1325, %v1346
      %v1362 = vadd.f32 %v1326, %v1346
      %v1363 = vadd.f32 %v1327, %v1346
      %v1364 = vadd.f32 %v1328, %v1346
      %v1365 = vadd.f32 %v1329, %v1346
      %v1366 = vadd.f32 %v1330, %v1346
      %v1367 = vadd.f32 %v1331, %v1346
      %v1368 = vadd.f32 %v1332, %v1346
      %v1369 = vadd.f32 %v1333, %v1346
      %v1370 = vadd.f32 %v1334, %v1346
      %v1371 = vadd.f32 %v1335, %v1346
      %v1372 = vadd.f32 %v1336, %v1346
      %v1373 = vadd.f32 %v1337, %v1346
      %v1374 = vadd.f32 %v1338, %v1346
      %v1375 = vadd.f32 %v1339, %v1346
      %v1376 = vadd.f32 %v1340, %v1346
      %v1377 = vadd.f32 %v1341, %v1346
      %v1378 = vadd.f32 %v1342, %v1346
      %v1379 = vadd.f32 %v1343, %v1346
      %v1380 = vmax.f32 %v1348, 0.0
      %v1381 = vmax.f32 %v1349, 0.0
      %v1382 = vmax.f32 %v1350, 0.0
      %v1383 = vmax.f32 %v1351, 0.0
      %v1384 = vmax.f32 %v1352, 0.0
      %v1385 = vmax.f32 %v1353, 0.0
      %v1386 = vmax.f32 %v1354, 0.0
      %v1387 = vmax.f32 %v1355, 0.0
      %v1388 = vmax.f32 %v1356, 0.0
      %v1389 = vmax.f32 %v1357, 0.0
      %v1390 = vmax.f32 %v1358, 0.0
      %v1391 = vmax.f32 %v1359, 0.0
      %v1392 = vmax.f32 %v1360, 0.0
      %v1393 = vmax.f32 %v1361, 0.0
      %v1394 = vmax.f32 %v1362, 0.0
      %v1395 = vmax.f32 %v1363, 0.0
      %v1396 = vmax.f32 %v1364, 0.0
      %v1397 = vmax.f32 %v1365, 0.0
      %v1398 = vmax.f32 %v1366, 0.0
      %v1399 = vmax.f32 %v1367, 0.0
      %v1400 = vmax.f32 %v1368, 0.0
      %v1401 = vmax.f32 %v1369, 0.0
      %v1402 = vmax.f32 %v1370, 0.0
      %v1403 = vmax.f32 %v1371, 0.0
      %v1404 = vmax.f32 %v1372, 0.0
      %v1405 = vmax.f32 %v1373, 0.0
      %v1406 = vmax.f32 %v1374, 0.0
      %v1407 = vmax.f32 %v1375, 0.0
      %v1408 = vmax.f32 %v1376, 0.0
      %v1409 = vmax.f32 %v1377, 0.0
      %v1410 = vmax.f32 %v1378, 0.0
      %v1411 = vmax.f32 %v1379, 0.0
      %v1412 = vld [vmem:[%s3] sm:$0x1]
      %v1414 = vperm.slane %v1412, 0
      %v1416 = vmul.f32 %v1380, %v1414
      %v1417 = vmul.f32 %v1381, %v1414
      %v1418 = vmul.f32 %v1382, %v1414
      %v1419 = vmul.f32 %v1383, %v1414
      %v1420 = vmul.f32 %v1384, %v1414
      %v1421 = vmul.f32 %v1385, %v1414
      %v1422 = vmul.f32 %v1386, %v1414
      %v1423 = vmul.f32 %v1387, %v1414
      %v1424 = vmul.f32 %v1388, %v1414
      %v1425 = vmul.f32 %v1389, %v1414
      %v1426 = vmul.f32 %v1390, %v1414
      %v1427 = vmul.f32 %v1391, %v1414
      %v1428 = vmul.f32 %v1392, %v1414
      %v1429 = vmul.f32 %v1393, %v1414
      %v1430 = vmul.f32 %v1394, %v1414
      %v1431 = vmul.f32 %v1395, %v1414
      %v1432 = vmul.f32 %v1396, %v1414
      %v1433 = vmul.f32 %v1397, %v1414
      %v1434 = vmul.f32 %v1398, %v1414
      %v1435 = vmul.f32 %v1399, %v1414
      %v1436 = vmul.f32 %v1400, %v1414
      %v1437 = vmul.f32 %v1401, %v1414
      %v1438 = vmul.f32 %v1402, %v1414
      %v1439 = vmul.f32 %v1403, %v1414
      %v1440 = vmul.f32 %v1404, %v1414
      %v1441 = vmul.f32 %v1405, %v1414
      %v1442 = vmul.f32 %v1406, %v1414
      %v1443 = vmul.f32 %v1407, %v1414
      %v1444 = vmul.f32 %v1408, %v1414
      %v1445 = vmul.f32 %v1409, %v1414
      %v1446 = vmul.f32 %v1410, %v1414
      %v1447 = vmul.f32 %v1411, %v1414
      %v1448 = vld [vmem:[%s4] sm:$0x1]
      %v1450 = vperm.slane %v1448, 0
      %v1452 = vadd.f32 %v1416, %v1450
      %v1453 = vadd.f32 %v1417, %v1450
      %v1454 = vadd.f32 %v1418, %v1450
      %v1455 = vadd.f32 %v1419, %v1450
      %v1456 = vadd.f32 %v1420, %v1450
      %v1457 = vadd.f32 %v1421, %v1450
      %v1458 = vadd.f32 %v1422, %v1450
      %v1459 = vadd.f32 %v1423, %v1450
      %v1460 = vadd.f32 %v1424, %v1450
      %v1461 = vadd.f32 %v1425, %v1450
      %v1462 = vadd.f32 %v1426, %v1450
      %v1463 = vadd.f32 %v1427, %v1450
      %v1464 = vadd.f32 %v1428, %v1450
      %v1465 = vadd.f32 %v1429, %v1450
      %v1466 = vadd.f32 %v1430, %v1450
      %v1467 = vadd.f32 %v1431, %v1450
      %v1468 = vadd.f32 %v1432, %v1450
      %v1469 = vadd.f32 %v1433, %v1450
      %v1470 = vadd.f32 %v1434, %v1450
      %v1471 = vadd.f32 %v1435, %v1450
      %v1472 = vadd.f32 %v1436, %v1450
      %v1473 = vadd.f32 %v1437, %v1450
      %v1474 = vadd.f32 %v1438, %v1450
      %v1475 = vadd.f32 %v1439, %v1450
      %v1476 = vadd.f32 %v1440, %v1450
      %v1477 = vadd.f32 %v1441, %v1450
      %v1478 = vadd.f32 %v1442, %v1450
      %v1479 = vadd.f32 %v1443, %v1450
      %v1480 = vadd.f32 %v1444, %v1450
      %v1481 = vadd.f32 %v1445, %v1450
      %v1482 = vadd.f32 %v1446, %v1450
      %v1483 = vadd.f32 %v1447, %v1450
      %vm1484 = vcmask 261120
      %1485 = vst.msk [vmem:[%s224] sm:$0xff] %vm1484, %v1452
      %1486 = vst.msk [vmem:[%s224 + $0x8] sm:$0xff] %vm1484, %v1453
      %1487 = vst.msk [vmem:[%s224 + $0x10] sm:$0xff] %vm1484, %v1454
      %1488 = vst.msk [vmem:[%s224 + $0x18] sm:$0xff] %vm1484, %v1455
      %1489 = vst.msk [vmem:[%s224 + $0x20] sm:$0xff] %vm1484, %v1456
      %1490 = vst.msk [vmem:[%s224 + $0x28] sm:$0xff] %vm1484, %v1457
      %1491 = vst.msk [vmem:[%s224 + $0x30] sm:$0xff] %vm1484, %v1458
      %1492 = vst.msk [vmem:[%s224 + $0x38] sm:$0xff] %vm1484, %v1459
      %1493 = vst.msk [vmem:[%s224 + $0x40] sm:$0xff] %vm1484, %v1460
      %1494 = vst.msk [vmem:[%s224 + $0x48] sm:$0xff] %vm1484, %v1461
      %1495 = vst.msk [vmem:[%s224 + $0x50] sm:$0xff] %vm1484, %v1462
      %1496 = vst.msk [vmem:[%s224 + $0x58] sm:$0xff] %vm1484, %v1463
      %1497 = vst.msk [vmem:[%s224 + $0x60] sm:$0xff] %vm1484, %v1464
      %1498 = vst.msk [vmem:[%s224 + $0x68] sm:$0xff] %vm1484, %v1465
      %1499 = vst.msk [vmem:[%s224 + $0x70] sm:$0xff] %vm1484, %v1466
      %1500 = vst.msk [vmem:[%s224 + $0x78] sm:$0xff] %vm1484, %v1467
      %1501 = vst.msk [vmem:[%s224 + $0x80] sm:$0xff] %vm1484, %v1468
      %1502 = vst.msk [vmem:[%s224 + $0x88] sm:$0xff] %vm1484, %v1469
      %1503 = vst.msk [vmem:[%s224 + $0x90] sm:$0xff] %vm1484, %v1470
      %1504 = vst.msk [vmem:[%s224 + $0x98] sm:$0xff] %vm1484, %v1471
      %1505 = vst.msk [vmem:[%s224 + $0xa0] sm:$0xff] %vm1484, %v1472
      %1506 = vst.msk [vmem:[%s224 + $0xa8] sm:$0xff] %vm1484, %v1473
      %1507 = vst.msk [vmem:[%s224 + $0xb0] sm:$0xff] %vm1484, %v1474
      %1508 = vst.msk [vmem:[%s224 + $0xb8] sm:$0xff] %vm1484, %v1475
      %1509 = vst.msk [vmem:[%s224 + $0xc0] sm:$0xff] %vm1484, %v1476
      %1510 = vst.msk [vmem:[%s224 + $0xc8] sm:$0xff] %vm1484, %v1477
      %1511 = vst.msk [vmem:[%s224 + $0xd0] sm:$0xff] %vm1484, %v1478
      %1512 = vst.msk [vmem:[%s224 + $0xd8] sm:$0xff] %vm1484, %v1479
      %1513 = vst.msk [vmem:[%s224 + $0xe0] sm:$0xff] %vm1484, %v1480
      %1514 = vst.msk [vmem:[%s224 + $0xe8] sm:$0xff] %vm1484, %v1481
      %1515 = vst.msk [vmem:[%s224 + $0xf0] sm:$0xff] %vm1484, %v1482
      %1516 = vst.msk [vmem:[%s224 + $0xf8] sm:$0xff] %vm1484, %v1483
      %p1517 = scmp.lt.s32.totalorder %s16, 1
      %s1518 = scalar_select %p1517, %s16, 1
      %s1519 = smul.addr %s1518, 32
      %s1520 = smul.addr %s1519, 8
      %s1521 = scalar_lea.vmem %s5, %s1520
      // Predicated region
      $region41: #{tpu_custom_call.1} parent=39 // pred_check
        %p1522 = pneg %p144
      $region42: #{tpu_custom_call.1} parent=39 // pred_check_branch
        %1524 = sbr.rel (%p1522) target = $region44
      $region43: #{tpu_custom_call.1} parent=39 // pred_region
        _
      $region44: #{tpu_custom_call.1} parent=39 // pred_fallthru
        _
    $region40: #{tpu_custom_call.1} parent=5 // pred_fallthru
      _
    %p1525 = scmp.le.s32.totalorder 2, %s11
    // Predicated region
    $region45: #{tpu_custom_call.1} parent=5 // pred_check
      %p1526 = pneg %p1525
    $region46: #{tpu_custom_call.1} parent=5 // pred_check_branch
      %1528 = sbr.rel (%p1526) target = $region48
    $region47: #{tpu_custom_call.1} parent=5 // pred_region
      %s1529 = ssub.s32 %s11, 2
      // Predicated region
      $region49: #{tpu_custom_call.1} parent=47 // pred_check
        %p1530 = pneg %p150
      $region50: #{tpu_custom_call.1} parent=47 // pred_check_branch
        %1532 = sbr.rel (%p1530) target = $region52
      $region51: #{tpu_custom_call.1} parent=47 // pred_region
        %p1533 = scmp.lt.s32.totalorder %s17, 1
        %s1534 = scalar_select %p1533, %s17, 1
        %s1535 = smul.addr %s1534, 32
        %s1536 = smul.addr %s1535, 8
        %s1537 = scalar_lea.vmem %s5, %s1536
      $region52: #{tpu_custom_call.1} parent=47 // pred_fallthru
        _
    $region48: #{tpu_custom_call.1} parent=5 // pred_fallthru
      _
  $region6: #{tpu_custom_call.1} parent=0 // loop_footer
    %s15 = sadd.s32 1, %s11
  $region7: #{tpu_custom_call.1} parent=0 // loop_footer_branch
    %10 = sbr.rel target = $region3
  $region8: #{tpu_custom_call.1} parent=0 // loop_exit
    _

</llo_original>
